<compile_context>
chip_gen: v6e
topology: v6e:2x2x1
jax: 0.10.0
libtpu: 0.0.40
codegen_flags: <defaults>
</compile_context>

<pallas_src>
import jax
import jax.numpy as jnp
from jax import lax
from jax.experimental import pallas as pl
from jax.experimental.pallas import tpu as pltpu

NEG_SLOPE = 0.01  # torch.nn.LeakyReLU default negative_slope


def _leaky_relu(x):
    return jnp.where(x > 0, x, NEG_SLOPE * x)


def _round_up(a, m):
    return (a + m - 1) // m * m


def mlp_kernel(x_ref, w1_ref, b1_ref, w2_ref, b2_ref, w3t_ref, b3_ref, o_ref):
    # One batch tile per grid step; the whole (tiny) weight stack is VMEM-resident.
    cdt = w1_ref.dtype                      # matmul compute dtype (bf16 or f32)
    x = x_ref[...].astype(cdt)              # [tb, obs]

    # Layer 1: LeakyReLU(x @ W1 + b1); Dropout(0.2) -> identity (eval mode).
    h1 = jnp.dot(x, w1_ref[...], preferred_element_type=jnp.float32) + b1_ref[...]
    h1 = _leaky_relu(h1).astype(cdt)        # [tb, 64]

    # Layer 2: LeakyReLU(h1 @ W2 + b2); Dropout(0.5) -> identity (eval mode).
    h2 = jnp.dot(h1, w2_ref[...], preferred_element_type=jnp.float32) + b2_ref[...]
    h2 = _leaky_relu(h2)                    # [tb, 64] (f32)

    # Layer 3 (output width 1), computed transposed so the batch lands on the
    # lane axis -> lane-dense unmasked stores instead of a [tb, 1] column.
    #   y[r, b] = sum_k W3[k] * h2[b, k]   (all 8 broadcast rows identical)
    w3_rows = jnp.broadcast_to(w3t_ref[...], (8, w3t_ref.shape[1]))   # [8, 64]
    y8 = lax.dot_general(
        w3_rows, h2,
        dimension_numbers=(((1,), (1,)), ((), ())),   # contract last dims (NT)
        preferred_element_type=jnp.float32)           # [8, tb]
    y = jnp.tanh(y8[0:1, :] + b3_ref[...])            # [1, tb]
    o_ref[...] = y.reshape(o_ref.shape).astype(o_ref.dtype)


def human_reward_network(x, params, *, tile_b=512, compute_dtype=jnp.bfloat16):
    """Fused eval-mode forward. x: [B, obs] float -> [B, 1] float32.

    Weights are stored transposed vs torch.nn.Linear: W_l is [in, out]."""
    w1, b1, w2, b2, w3, b3 = params
    B, obs = x.shape
    h1_dim = w1.shape[1]
    h2_dim = w2.shape[1]

    # Batch tile: multiple of 8, capped so there are >=2 grid steps whenever the
    # batch allows it (keeps both v7x TensorCores busy on the 'parallel' axis).
    tb = min(int(tile_b), max(8, _round_up(pl.cdiv(B, 2), 8)))
    tb = max(8, _round_up(tb, 8))
    n_tiles = pl.cdiv(B, tb)

    cdt = jnp.dtype(compute_dtype)
    w1c = w1.astype(cdt)                               # bf16 MXU operands
    w2c = w2.astype(cdt)
    w3t = jnp.transpose(w3).astype(jnp.float32)        # [1, h2_dim], tiny -> f32
    b1f = b1.astype(jnp.float32)
    b2f = b2.astype(jnp.float32)
    b3f = b3.astype(jnp.float32)

    # No jnp.pad of x: Pallas handles the partial last batch block; outputs for
    # the padded rows are garbage and sliced off below.
    y_lanes = pl.pallas_call(
        mlp_kernel,
        out_shape=jax.ShapeDtypeStruct((n_tiles, 1, tb), jnp.float32),
        grid=(n_tiles,),
        in_specs=[
            pl.BlockSpec((tb, obs), lambda i: (i, 0)),          # x batch tile
            pl.BlockSpec((obs, h1_dim), lambda i: (0, 0)),      # W1 (resident)
            pl.BlockSpec((1, h1_dim), lambda i: (0, 0)),        # b1
            pl.BlockSpec((h1_dim, h2_dim), lambda i: (0, 0)),   # W2
            pl.BlockSpec((1, h2_dim), lambda i: (0, 0)),        # b2
            pl.BlockSpec((1, h2_dim), lambda i: (0, 0)),        # W3^T
            pl.BlockSpec((1, 1), lambda i: (0, 0)),             # b3
        ],
        # Lane-dense output blocks (last dim = tb) -> full-width vst, no masks.
        out_specs=pl.BlockSpec((1, 1, tb), lambda i: (i, 0, 0)),
        compiler_params=pltpu.CompilerParams(
            dimension_semantics=("parallel",),
            # Headroom over v5e's 16 MiB scoped default; equals v6e/v7x default.
            vmem_limit_bytes=32 * 1024 * 1024,
        ),
    )(x, w1c, b1f, w2c, b2f, w3t, b3f)

    return y_lanes.reshape(n_tiles * tb)[:B].reshape(B, 1)


def init_params(key, obs_size, hidden_sizes=(64, 64)):
    """Deterministic init mirroring torch.nn.Linear default (uniform ±1/sqrt(fan_in)).

    Weights stored as [in, out] (transposed vs torch's [out, in]); biases [1, out]."""
    sizes = [obs_size] + list(hidden_sizes) + [1]
    params = []
    for j in range(len(sizes) - 1):
        fan_in, fan_out = sizes[j], sizes[j + 1]
        bound = 1.0 / jnp.sqrt(jnp.float32(fan_in))
        key, kw, kb = jax.random.split(key, 3)
        w = jax.random.uniform(kw, (fan_in, fan_out), jnp.float32, -bound, bound)
        b = jax.random.uniform(kb, (1, fan_out), jnp.float32, -bound, bound)
        params += [w, b]
    return tuple(params)


def reference_forward(x, params):
    """Pure-JAX f32 reference of the eval-mode forward pass."""
    w1, b1, w2, b2, w3, b3 = params
    h = _leaky_relu(x @ w1 + b1)
    h = _leaky_relu(h @ w2 + b2)
    return jnp.tanh(h @ w3 + b3)


if __name__ == "__main__":
    key = jax.random.PRNGKey(0)
    kx, kp, kx2 = jax.random.split(key, 3)

    B, OBS = 8, 32
    x = jax.random.normal(kx, (B, OBS), jnp.float32)
    params = init_params(kp, OBS, hidden_sizes=(64, 64))
    y_ref = reference_forward(x, params)

    # f32 compute path: tight check of kernel structure / layout plumbing.
    y_f32 = jax.block_until_ready(
        human_reward_network(x, params, compute_dtype=jnp.float32))
    assert y_f32.shape == (B, 1), y_f32.shape
    assert jnp.allclose(y_f32, y_ref, atol=1e-5, rtol=1e-5), "f32 mismatch"

    # Default bf16-matmul path: looser tolerance vs f32 reference.
    y_bf16 = jax.block_until_ready(human_reward_network(x, params))
    assert y_bf16.shape == (B, 1), y_bf16.shape
    assert jnp.allclose(y_bf16, y_ref, atol=5e-2, rtol=5e-2), "bf16 mismatch"

    # Unaligned batch: exercises the pad-free partial last block + 2-step grid.
    B2 = 13
    x2 = jax.random.normal(kx2, (B2, OBS), jnp.float32)
    y2 = jax.block_until_ready(
        human_reward_network(x2, params, compute_dtype=jnp.float32))
    y2_ref = reference_forward(x2, params)
    assert y2.shape == (B2, 1), y2.shape
    assert jnp.allclose(y2, y2_ref, atol=1e-5, rtol=1e-5), "unaligned-B mismatch"

    print("KERNEL_OK")
</pallas_src>

<mosaic_0001>
module attributes {stable_mosaic.version = 11 : i64} {
  func.func @mlp_kernel(%arg0: i32, %arg1: memref<8x32xf32, #tpu.memory_space<vmem>>, %arg2: memref<32x64xf32, #tpu.memory_space<vmem>>, %arg3: memref<1x64xf32, #tpu.memory_space<vmem>>, %arg4: memref<64x64xf32, #tpu.memory_space<vmem>>, %arg5: memref<1x64xf32, #tpu.memory_space<vmem>>, %arg6: memref<1x64xf32, #tpu.memory_space<vmem>>, %arg7: memref<1x1xf32, #tpu.memory_space<vmem>>, %arg8: memref<1x1x8xf32, #tpu.memory_space<vmem>>) attributes {dimension_semantics = [#tpu.dimension_semantics<parallel>], iteration_bounds = array<i64: 1>, scalar_prefetch = 0 : i64, scratch_operands = 0 : i64, tpu.core_type = #tpu.core_type<tc>, window_params = [{transform_indices = @transform_0, window_bounds = array<i64: 8, 32>}, {pipeline_mode = #tpu.pipeline_mode<synchronous>, transform_indices = @transform_1, window_bounds = array<i64: 32, 64>}, {pipeline_mode = #tpu.pipeline_mode<synchronous>, transform_indices = @transform_2, window_bounds = array<i64: 1, 64>}, {pipeline_mode = #tpu.pipeline_mode<synchronous>, transform_indices = @transform_3, window_bounds = array<i64: 64, 64>}, {pipeline_mode = #tpu.pipeline_mode<synchronous>, transform_indices = @transform_4, window_bounds = array<i64: 1, 64>}, {pipeline_mode = #tpu.pipeline_mode<synchronous>, transform_indices = @transform_5, window_bounds = array<i64: 1, 64>}, {pipeline_mode = #tpu.pipeline_mode<synchronous>, transform_indices = @transform_6, window_bounds = array<i64: 1, 1>}, {transform_indices = @transform_7, window_bounds = array<i64: 1, 1, 8>}]} {
    %c0 = arith.constant 0 : index
    %c0_0 = arith.constant 0 : index
    %0 = vector.load %arg1[%c0, %c0_0] : memref<8x32xf32, #tpu.memory_space<vmem>>, vector<8x32xf32>
    %c0_1 = arith.constant 0 : index
    %c0_2 = arith.constant 0 : index
    %1 = vector.load %arg2[%c0_1, %c0_2] : memref<32x64xf32, #tpu.memory_space<vmem>>, vector<32x64xf32>
    %cst = arith.constant dense<0.000000e+00> : vector<8x64xf32>
    %2 = tpu.matmul %0, %1, %cst {dimension_numbers = #tpu.dot_dimension_numbers<[1], [0], [0], [1], [0, 0, 1, 1], [], []>} : vector<8x32xf32>, vector<32x64xf32>, vector<8x64xf32> -> vector<8x64xf32>
    %c0_3 = arith.constant 0 : index
    %c0_4 = arith.constant 0 : index
    %3 = vector.load %arg3[%c0_3, %c0_4] : memref<1x64xf32, #tpu.memory_space<vmem>>, vector<1x64xf32>
    %4 = vector.broadcast %3 : vector<1x64xf32> to vector<8x64xf32>
    %5 = arith.addf %2, %4 : vector<8x64xf32>
    %cst_5 = arith.constant 0.000000e+00 : f32
    %6 = vector.broadcast %cst_5 : f32 to vector<8x64xf32>
    %7 = arith.cmpf ogt, %5, %6 : vector<8x64xf32>
    %cst_6 = arith.constant 0.00999999977 : f32
    %8 = vector.broadcast %cst_6 : f32 to vector<8x64xf32>
    %9 = arith.mulf %8, %5 : vector<8x64xf32>
    %10 = arith.select %7, %5, %9 : vector<8x64xi1>, vector<8x64xf32>
    %c0_7 = arith.constant 0 : index
    %c0_8 = arith.constant 0 : index
    %11 = vector.load %arg4[%c0_7, %c0_8] : memref<64x64xf32, #tpu.memory_space<vmem>>, vector<64x64xf32>
    %cst_9 = arith.constant dense<0.000000e+00> : vector<8x64xf32>
    %12 = tpu.matmul %10, %11, %cst_9 {dimension_numbers = #tpu.dot_dimension_numbers<[1], [0], [0], [1], [0, 0, 1, 1], [], []>} : vector<8x64xf32>, vector<64x64xf32>, vector<8x64xf32> -> vector<8x64xf32>
    %c0_10 = arith.constant 0 : index
    %c0_11 = arith.constant 0 : index
    %13 = vector.load %arg5[%c0_10, %c0_11] : memref<1x64xf32, #tpu.memory_space<vmem>>, vector<1x64xf32>
    %14 = vector.broadcast %13 : vector<1x64xf32> to vector<8x64xf32>
    %15 = arith.addf %12, %14 : vector<8x64xf32>
    %cst_12 = arith.constant 0.000000e+00 : f32
    %16 = vector.broadcast %cst_12 : f32 to vector<8x64xf32>
    %17 = arith.cmpf ogt, %15, %16 : vector<8x64xf32>
    %cst_13 = arith.constant 0.00999999977 : f32
    %18 = vector.broadcast %cst_13 : f32 to vector<8x64xf32>
    %19 = arith.mulf %18, %15 : vector<8x64xf32>
    %20 = arith.select %17, %15, %19 : vector<8x64xi1>, vector<8x64xf32>
    %c0_14 = arith.constant 0 : index
    %c0_15 = arith.constant 0 : index
    %21 = vector.load %arg6[%c0_14, %c0_15] : memref<1x64xf32, #tpu.memory_space<vmem>>, vector<1x64xf32>
    %22 = vector.shape_cast %21 : vector<1x64xf32> to vector<1x64xf32>
    %23 = vector.broadcast %22 : vector<1x64xf32> to vector<8x64xf32>
    %cst_16 = arith.constant dense<0.000000e+00> : vector<8x8xf32>
    %24 = tpu.matmul %23, %20, %cst_16 {dimension_numbers = #tpu.dot_dimension_numbers<[1], [1], [0], [0], [0, 0, 1, 0], [], []>} : vector<8x64xf32>, vector<8x64xf32>, vector<8x8xf32> -> vector<8x8xf32>
    %25 = vector.extract_strided_slice %24 {offsets = [0, 0], sizes = [1, 8], strides = [1, 1]} : vector<8x8xf32> to vector<1x8xf32>
    %c0_17 = arith.constant 0 : index
    %c0_18 = arith.constant 0 : index
    %26 = vector.load %arg7[%c0_17, %c0_18] : memref<1x1xf32, #tpu.memory_space<vmem>>, vector<1x1xf32>
    %27 = vector.broadcast %26 : vector<1x1xf32> to vector<1x8xf32>
    %28 = arith.addf %25, %27 : vector<1x8xf32>
    %29 = math.tanh %28 : vector<1x8xf32>
    %30 = vector.shape_cast %29 : vector<1x8xf32> to vector<1x1x8xf32>
    %c0_19 = arith.constant 0 : index
    %c0_20 = arith.constant 0 : index
    %c0_21 = arith.constant 0 : index
    %31 = vector.load %arg8[%c0_19, %c0_20, %c0_21] : memref<1x1x8xf32, #tpu.memory_space<vmem>>, vector<1x1x8xf32>
    tpu.vector_store %arg8[%c0_19, %c0_20, %c0_21], %30 {strides = array<i32>} : memref<1x1x8xf32, #tpu.memory_space<vmem>>, vector<1x1x8xf32>,
    return
  }
  func.func @transform_0(%arg0: i32) -> (i32, i32) {
    %c0_i32 = arith.constant 0 : i32
    %c0_i32_0 = arith.constant 0 : i32
    return %arg0, %c0_i32 : i32, i32
  }
  func.func @transform_1(%arg0: i32) -> (i32, i32) {
    %c0_i32 = arith.constant 0 : i32
    %c0_i32_0 = arith.constant 0 : i32
    %c0_i32_1 = arith.constant 0 : i32
    return %c0_i32, %c0_i32_0 : i32, i32
  }
  func.func @transform_2(%arg0: i32) -> (i32, i32) {
    %c0_i32 = arith.constant 0 : i32
    %c0_i32_0 = arith.constant 0 : i32
    %c0_i32_1 = arith.constant 0 : i32
    return %c0_i32, %c0_i32_0 : i32, i32
  }
  func.func @transform_3(%arg0: i32) -> (i32, i32) {
    %c0_i32 = arith.constant 0 : i32
    %c0_i32_0 = arith.constant 0 : i32
    %c0_i32_1 = arith.constant 0 : i32
    return %c0_i32, %c0_i32_0 : i32, i32
  }
  func.func @transform_4(%arg0: i32) -> (i32, i32) {
    %c0_i32 = arith.constant 0 : i32
    %c0_i32_0 = arith.constant 0 : i32
    %c0_i32_1 = arith.constant 0 : i32
    return %c0_i32, %c0_i32_0 : i32, i32
  }
  func.func @transform_5(%arg0: i32) -> (i32, i32) {
    %c0_i32 = arith.constant 0 : i32
    %c0_i32_0 = arith.constant 0 : i32
    %c0_i32_1 = arith.constant 0 : i32
    return %c0_i32, %c0_i32_0 : i32, i32
  }
  func.func @transform_6(%arg0: i32) -> (i32, i32) {
    %c0_i32 = arith.constant 0 : i32
    %c0_i32_0 = arith.constant 0 : i32
    %c0_i32_1 = arith.constant 0 : i32
    return %c0_i32, %c0_i32_0 : i32, i32
  }
  func.func @transform_7(%arg0: i32) -> (i32, i32, i32) {
    %c0_i32 = arith.constant 0 : i32
    %c0_i32_0 = arith.constant 0 : i32
    %c0_i32_1 = arith.constant 0 : i32
    return %arg0, %c0_i32, %c0_i32_0 : i32, i32, i32
  }
}

</mosaic_0001>

<llo_original>
// kernel: tpu_custom_call.1
$region0: #{tpu_custom_call.1}
  #allocation0 [shape = 'u32[]', space=smem, size = 0x4, offset = 0x4, fixed_abs, tag = 'smem constant byte address 0x4 - core index']
  #allocation1 [shape = 'u32[144,128]{1,0:T(1,128)}', space=vmem, size = 0x12000, scoped, tag = 'internal scratch']
  #allocation2 [shape = 'f32[1,1]{1,0:T(1,128)S(1)}', space=vmem, size = 0x200, scoped, tag = 'scoped memory for tpu_custom_call.1']
  %s0 = inlined_call_operand.hbm [shape: f32[8,32], index: 0, kind: input, shape index: {}]
  %s1 = inlined_call_operand.hbm [shape: f32[32,64], index: 1, kind: input, shape index: {}]
  %s2 = inlined_call_operand.vmem [shape: f32[1,64], index: 2, kind: input, shape index: {}]
  %s3 = inlined_call_operand.hbm [shape: f32[64,64], index: 3, kind: input, shape index: {}]
  %s4 = inlined_call_operand.vmem [shape: f32[1,64], index: 4, kind: input, shape index: {}]
  %s5 = inlined_call_operand.vmem [shape: f32[1,64], index: 5, kind: input, shape index: {}]
  %s6 = inlined_call_operand.<no memory space> [shape: f32[1,1], index: 6, kind: input, shape index: {}]
  %s7 = inlined_call_operand.hbm [shape: f32[1,1,8], index: 7, kind: output, shape index: {}]
  %s8 = sld [smem:[#allocation0]]
  $region50: #{tpu_custom_call.1} parent=0
    _
  %s10 = ssub.s32 1, %s8
  %s11 = scalar_select 0, %s10, %s8
  %v12 = vstv %s6
  %13 = vst [vmem:[#allocation2] sm:$0x1] %v12
  $region1: #{tpu_custom_call.1} parent=0
    #allocation3 [shape = 'u8[4096]{0}', space=vmem, size = 0x1000, scoped, tag = 'input window, operand 0, single buffered']
    #allocation4 [shape = 's32[1]{0}', space=sflag, size = 0x4, scoped, tag = 'scoped memory for tpu_custom_call.1']
    #allocation5 [shape = 's32[1]{0}', space=sflag, size = 0x4, scoped, tag = 'scoped memory for tpu_custom_call.1']
    #allocation6 [shape = 'u8[16384]{0}', space=vmem, size = 0x4000, scoped, tag = 'input window, operand 1, single buffered']
    #allocation7 [shape = 's32[1]{0}', space=sflag, size = 0x4, scoped, tag = 'scoped memory for tpu_custom_call.1']
    #allocation8 [shape = 'u8[32768]{0}', space=vmem, size = 0x8000, scoped, tag = 'input window, operand 3, single buffered']
    #allocation9 [shape = 'u8[512]{0}', space=vmem, size = 0x400, scoped, tag = 'output window, operand 0, single buffered']
    %14 = vsyncpa [#allocation4], 0
    %15 = vsyncpa [#allocation7], 0
    %16 = vsyncpa [#allocation5], 0
    // Predicated region
    $region2: #{tpu_custom_call.1} parent=1 // pred_check
      _
    $region3: #{tpu_custom_call.1} parent=1 // pred_check_branch
      %18 = sbr.rel (0) target = $region5
    $region4: #{tpu_custom_call.1} parent=1 // pred_region
      %s20 = ssub.s32 128, 128
      %21 = vsyncadd [#allocation4], %s20
      %s23 = sshll.u32 [#allocation3], 4
      %s24 = int_to_ptr.vmem [resolvable:$true] %s23
      %26 = dma.hbm_to_vmem [thread:$0]  %s0, 128, %s24, [#allocation4]
    $region5: #{tpu_custom_call.1} parent=1 // pred_fallthru
      _
    // Predicated region
    $region6: #{tpu_custom_call.1} parent=1 // pred_check
      _
    $region7: #{tpu_custom_call.1} parent=1 // pred_check_branch
      %28 = sbr.rel (0) target = $region9
    $region8: #{tpu_custom_call.1} parent=1 // pred_region
      %s30 = ssub.s32 512, 512
      %31 = vsyncadd [#allocation7], %s30
      %s32 = sshll.u32 [#allocation6], 4
      %s33 = int_to_ptr.vmem [resolvable:$true] %s32
      %38 = dma.hbm_to_vmem [thread:$0]  %s1, 512, %s33, [#allocation7], 128, 128, 8
    $region9: #{tpu_custom_call.1} parent=1 // pred_fallthru
      _
    // Predicated region
    $region10: #{tpu_custom_call.1} parent=1 // pred_check
      _
    $region11: #{tpu_custom_call.1} parent=1 // pred_check_branch
      %40 = sbr.rel (0) target = $region13
    $region12: #{tpu_custom_call.1} parent=1 // pred_region
      _
    $region13: #{tpu_custom_call.1} parent=1 // pred_fallthru
      _
    // Predicated region
    $region14: #{tpu_custom_call.1} parent=1 // pred_check
      _
    $region15: #{tpu_custom_call.1} parent=1 // pred_check_branch
      %42 = sbr.rel (0) target = $region17
    $region16: #{tpu_custom_call.1} parent=1 // pred_region
      %s44 = ssub.s32 1024, 1024
      %45 = vsyncadd [#allocation7], %s44
      %s46 = sshll.u32 [#allocation8], 4
      %s47 = int_to_ptr.vmem [resolvable:$true] %s46
      %52 = dma.hbm_to_vmem [thread:$0]  %s3, 1024, %s47, [#allocation7], 128, 128, 8
    $region17: #{tpu_custom_call.1} parent=1 // pred_fallthru
      _
    // Predicated region
    $region18: #{tpu_custom_call.1} parent=1 // pred_check
      _
    $region19: #{tpu_custom_call.1} parent=1 // pred_check_branch
      %54 = sbr.rel (0) target = $region21
    $region20: #{tpu_custom_call.1} parent=1 // pred_region
      _
    $region21: #{tpu_custom_call.1} parent=1 // pred_fallthru
      _
    // Predicated region
    $region22: #{tpu_custom_call.1} parent=1 // pred_check
      _
    $region23: #{tpu_custom_call.1} parent=1 // pred_check_branch
      %56 = sbr.rel (0) target = $region25
    $region24: #{tpu_custom_call.1} parent=1 // pred_region
      _
    $region25: #{tpu_custom_call.1} parent=1 // pred_fallthru
      _
    // Predicated region
    $region26: #{tpu_custom_call.1} parent=1 // pred_check
      _
    $region27: #{tpu_custom_call.1} parent=1 // pred_check_branch
      %58 = sbr.rel (0) target = $region29
    $region28: #{tpu_custom_call.1} parent=1 // pred_region
      _
    $region29: #{tpu_custom_call.1} parent=1 // pred_fallthru
      _
    // Predicated region
    $region30: #{tpu_custom_call.1} parent=1 // pred_check
      _
    $region31: #{tpu_custom_call.1} parent=1 // pred_check_branch
      %60 = sbr.rel (0) target = $region33
    $region32: #{tpu_custom_call.1} parent=1 // pred_region
      %61 = dma.done [#allocation4], 128
    $region33: #{tpu_custom_call.1} parent=1 // pred_fallthru
      _
    // Predicated region
    $region34: #{tpu_custom_call.1} parent=1 // pred_check
      _
    $region35: #{tpu_custom_call.1} parent=1 // pred_check_branch
      %63 = sbr.rel (0) target = $region37
    $region36: #{tpu_custom_call.1} parent=1 // pred_region
      %64 = dma.done [#allocation7], 512
    $region37: #{tpu_custom_call.1} parent=1 // pred_fallthru
      _
    // Predicated region
    $region38: #{tpu_custom_call.1} parent=1 // pred_check
      _
    $region39: #{tpu_custom_call.1} parent=1 // pred_check_branch
      %66 = sbr.rel (0) target = $region41
    $region40: #{tpu_custom_call.1} parent=1 // pred_region
      %67 = dma.done [#allocation7], 1024
    $region41: #{tpu_custom_call.1} parent=1 // pred_fallthru
      _
    %v68 = vld [vmem:[#allocation3] sm:$0xff]
    %v69 = vld [vmem:[#allocation6] sm:$0xff]
    %v70 = vld [vmem:[#allocation6 + $0x8] sm:$0xff]
    %v71 = vld [vmem:[#allocation6 + $0x10] sm:$0xff]
    %v72 = vld [vmem:[#allocation6 + $0x18] sm:$0xff]
    %v73 = vld [vmem:[%s2] sm:$0x1]
    %v75 = vlaneseq
    %v76 = vshrl.u32 %v75, 7
    %v77 = vsub.s32 0, %v76
    %v78 = vrot.slane %v73, %v77
    %vm80 = vcmask 261120
    %v82 = vsel %vm80, %v68, 0
    %84 = vmatprep.subr.mxu0 0.0
    %85 = vmatpush1.msra.mxu0 0.0
    %86 = vmatprep.subr.mxu0 0.0
    %87 = vmatpush1.msra.mxu0 0.0
    %88 = vmatprep.subr.mxu0 0.0
    %89 = vmatpush1.msra.mxu0 0.0
    %90 = vmatprep.subr.mxu0 0.0
    %91 = vmatpush1.msra.mxu0 0.0
    %92 = vmatprep.subr.mxu0 0.0
    %93 = vmatpush1.msra.mxu0 0.0
    %94 = vmatprep.subr.mxu0 0.0
    %95 = vmatpush1.msra.mxu0 0.0
    %96 = vmatprep.subr.mxu0 0.0
    %97 = vmatpush1.msra.mxu0 0.0
    %98 = vmatprep.subr.mxu0 0.0
    %99 = vmatpush1.msra.mxu0 0.0
    %100 = vmatprep.subr.mxu0 0.0
    %101 = vmatpush1.msra.mxu0 0.0
    %102 = vmatprep.subr.mxu0 0.0
    %103 = vmatpush1.msra.mxu0 0.0
    %104 = vmatprep.subr.mxu0 0.0
    %105 = vmatpush1.msra.mxu0 0.0
    %106 = vmatprep.subr.mxu0 0.0
    %107 = vmatpush1.msra.mxu0 0.0
    %108 = vmatprep.subr.mxu0 0.0
    %109 = vmatpush1.msra.mxu0 %v72
    %110 = vmatprep.subr.mxu0 0.0
    %111 = vmatpush1.msra.mxu0 %v71
    %112 = vmatprep.subr.mxu0 0.0
    %113 = vmatpush1.msra.mxu0 %v70
    %114 = vmatprep.subr.mxu0 0.0
    %115 = vmatpush1.msra.mxu0 %v69
    %116 = vmatprep.subr.mxu0 0.0
    %117 = vmatpush2.msra.mxu0 0.0
    %118 = vmatprep.subr.mxu0 0.0
    %119 = vmatpush2.msra.mxu0 0.0
    %120 = vmatprep.subr.mxu0 0.0
    %121 = vmatpush2.msra.mxu0 0.0
    %122 = vmatprep.subr.mxu0 0.0
    %123 = vmatpush2.msra.mxu0 0.0
    %124 = vmatprep.subr.mxu0 0.0
    %125 = vmatpush2.msra.mxu0 0.0
    %126 = vmatprep.subr.mxu0 0.0
    %127 = vmatpush2.msra.mxu0 0.0
    %128 = vmatprep.subr.mxu0 0.0
    %129 = vmatpush2.msra.mxu0 0.0
    %130 = vmatprep.subr.mxu0 0.0
    %131 = vmatpush2.msra.mxu0 0.0
    %132 = vmatprep.subr.mxu0 0.0
    %133 = vmatpush2.msra.mxu0 0.0
    %134 = vmatprep.subr.mxu0 0.0
    %135 = vmatpush2.msra.mxu0 0.0
    %136 = vmatprep.subr.mxu0 0.0
    %137 = vmatpush2.msra.mxu0 0.0
    %138 = vmatprep.subr.mxu0 0.0
    %139 = vmatpush2.msra.mxu0 0.0
    %140 = vmatprep.subr.mxu0 0.0
    %141 = vmatpush2.msra.mxu0 0.0
    %142 = vmatprep.subr.mxu0 0.0
    %143 = vmatpush2.msra.mxu0 0.0
    %144 = vmatprep.subr.mxu0 0.0
    %145 = vmatpush2.msra.mxu0 0.0
    %146 = vmatprep.subr.mxu0 0.0
    %147 = vmatpush2.msra.mxu0 0.0
    %148 = vmatprep.mubr.f32.mxu0 0.0
    %149 = vmatmul.mubr.f32.gmra.mxu0 %v82
    %v150 = vpop.f32.mrf.mxu0
    %v151 = vadd.f32 %v78, %v150
    %v152 = vpop.f32.mrf.mxu0
    %153 = vdwg.mxu0
    %vm154 = vcmp.gt.f32.partialorder %v151, 0.0
    %v155 = vmul.f32 %v151, 0.01
    %v156 = vsel %vm154, %v151, %v155
    %v157 = vld [vmem:[#allocation8] sm:$0xff]
    %v158 = vld [vmem:[#allocation8 + $0x8] sm:$0xff]
    %v159 = vld [vmem:[#allocation8 + $0x10] sm:$0xff]
    %v160 = vld [vmem:[#allocation8 + $0x18] sm:$0xff]
    %v161 = vld [vmem:[#allocation8 + $0x20] sm:$0xff]
    %v162 = vld [vmem:[#allocation8 + $0x28] sm:$0xff]
    %v163 = vld [vmem:[#allocation8 + $0x30] sm:$0xff]
    %v164 = vld [vmem:[#allocation8 + $0x38] sm:$0xff]
    %v165 = vld [vmem:[%s4] sm:$0x1]
    %v167 = vlaneseq
    %v168 = vshrl.u32 %v167, 7
    %v169 = vsub.s32 0, %v168
    %v170 = vrot.slane %v165, %v169
    %vm172 = vcmask 523264
    %v174 = vsel %vm172, %v156, 0
    %176 = vmatprep.subr.mxu0 0.0
    %177 = vmatpush1.msra.mxu0 0.0
    %178 = vmatprep.subr.mxu0 0.0
    %179 = vmatpush1.msra.mxu0 0.0
    %180 = vmatprep.subr.mxu0 0.0
    %181 = vmatpush1.msra.mxu0 0.0
    %182 = vmatprep.subr.mxu0 0.0
    %183 = vmatpush1.msra.mxu0 0.0
    %184 = vmatprep.subr.mxu0 0.0
    %185 = vmatpush1.msra.mxu0 0.0
    %186 = vmatprep.subr.mxu0 0.0
    %187 = vmatpush1.msra.mxu0 0.0
    %188 = vmatprep.subr.mxu0 0.0
    %189 = vmatpush1.msra.mxu0 0.0
    %190 = vmatprep.subr.mxu0 0.0
    %191 = vmatpush1.msra.mxu0 0.0
    %192 = vmatprep.subr.mxu0 0.0
    %193 = vmatpush1.msra.mxu0 %v164
    %194 = vmatprep.subr.mxu0 0.0
    %195 = vmatpush1.msra.mxu0 %v163
    %196 = vmatprep.subr.mxu0 0.0
    %197 = vmatpush1.msra.mxu0 %v162
    %198 = vmatprep.subr.mxu0 0.0
    %199 = vmatpush1.msra.mxu0 %v161
    %200 = vmatprep.subr.mxu0 0.0
    %201 = vmatpush1.msra.mxu0 %v160
    %202 = vmatprep.subr.mxu0 0.0
    %203 = vmatpush1.msra.mxu0 %v159
    %204 = vmatprep.subr.mxu0 0.0
    %205 = vmatpush1.msra.mxu0 %v158
    %206 = vmatprep.subr.mxu0 0.0
    %207 = vmatpush1.msra.mxu0 %v157
    %208 = vmatprep.subr.mxu0 0.0
    %209 = vmatpush2.msra.mxu0 0.0
    %210 = vmatprep.subr.mxu0 0.0
    %211 = vmatpush2.msra.mxu0 0.0
    %212 = vmatprep.subr.mxu0 0.0
    %213 = vmatpush2.msra.mxu0 0.0
    %214 = vmatprep.subr.mxu0 0.0
    %215 = vmatpush2.msra.mxu0 0.0
    %216 = vmatprep.subr.mxu0 0.0
    %217 = vmatpush2.msra.mxu0 0.0
    %218 = vmatprep.subr.mxu0 0.0
    %219 = vmatpush2.msra.mxu0 0.0
    %220 = vmatprep.subr.mxu0 0.0
    %221 = vmatpush2.msra.mxu0 0.0
    %222 = vmatprep.subr.mxu0 0.0
    %223 = vmatpush2.msra.mxu0 0.0
    %224 = vmatprep.subr.mxu0 0.0
    %225 = vmatpush2.msra.mxu0 0.0
    %226 = vmatprep.subr.mxu0 0.0
    %227 = vmatpush2.msra.mxu0 0.0
    %228 = vmatprep.subr.mxu0 0.0
    %229 = vmatpush2.msra.mxu0 0.0
    %230 = vmatprep.subr.mxu0 0.0
    %231 = vmatpush2.msra.mxu0 0.0
    %232 = vmatprep.subr.mxu0 0.0
    %233 = vmatpush2.msra.mxu0 0.0
    %234 = vmatprep.subr.mxu0 0.0
    %235 = vmatpush2.msra.mxu0 0.0
    %236 = vmatprep.subr.mxu0 0.0
    %237 = vmatpush2.msra.mxu0 0.0
    %238 = vmatprep.subr.mxu0 0.0
    %239 = vmatpush2.msra.mxu0 0.0
    %240 = vmatprep.mubr.f32.mxu0 0.0
    %241 = vmatmul.mubr.f32.gmra.mxu0 %v174
    %v242 = vpop.f32.mrf.mxu0
    %v243 = vadd.f32 %v170, %v242
    %v244 = vpop.f32.mrf.mxu0
    %245 = vdwg.mxu0
    %vm246 = vcmp.gt.f32.partialorder %v243, 0.0
    %v247 = vmul.f32 %v243, 0.01
    %v248 = vsel %vm246, %v243, %v247
    %v249 = vld [vmem:[%s5] sm:$0x1]
    %v251 = vlaneseq
    %v252 = vshrl.u32 %v251, 7
    %v253 = vsub.s32 0, %v252
    %v254 = vrot.slane %v249, %v253
    %v255 = vsel %vm172, %v254, 0
    %v258 = vsel %vm172, %v248, 0
    %260 = vmatprep.subr.mxu0 0.0
    %261 = vmatpush1.xpose.msra.mxu0 0.0
    %262 = vmatprep.subr.mxu0 0.0
    %263 = vmatpush1.xpose.msra.mxu0 0.0
    %264 = vmatprep.subr.mxu0 0.0
    %265 = vmatpush1.xpose.msra.mxu0 0.0
    %266 = vmatprep.subr.mxu0 0.0
    %267 = vmatpush1.xpose.msra.mxu0 0.0
    %268 = vmatprep.subr.mxu0 0.0
    %269 = vmatpush1.xpose.msra.mxu0 0.0
    %270 = vmatprep.subr.mxu0 0.0
    %271 = vmatpush1.xpose.msra.mxu0 0.0
    %272 = vmatprep.subr.mxu0 0.0
    %273 = vmatpush1.xpose.msra.mxu0 0.0
    %274 = vmatprep.subr.mxu0 0.0
    %275 = vmatpush1.xpose.msra.mxu0 0.0
    %276 = vmatprep.subr.mxu0 0.0
    %277 = vmatpush1.xpose.msra.mxu0 0.0
    %278 = vmatprep.subr.mxu0 0.0
    %279 = vmatpush1.xpose.msra.mxu0 0.0
    %280 = vmatprep.subr.mxu0 0.0
    %281 = vmatpush1.xpose.msra.mxu0 0.0
    %282 = vmatprep.subr.mxu0 0.0
    %283 = vmatpush1.xpose.msra.mxu0 0.0
    %284 = vmatprep.subr.mxu0 0.0
    %285 = vmatpush1.xpose.msra.mxu0 0.0
    %286 = vmatprep.subr.mxu0 0.0
    %287 = vmatpush1.xpose.msra.mxu0 0.0
    %288 = vmatprep.subr.mxu0 0.0
    %289 = vmatpush1.xpose.msra.mxu0 0.0
    %290 = vmatprep.subr.mxu0 0.0
    %291 = vmatpush1.xpose.msra.mxu0 %v258
    %292 = vmatprep.subr.mxu0 0.0
    %293 = vmatpush2.xpose.msra.mxu0 0.0
    %294 = vmatprep.subr.mxu0 0.0
    %295 = vmatpush2.xpose.msra.mxu0 0.0
    %296 = vmatprep.subr.mxu0 0.0
    %297 = vmatpush2.xpose.msra.mxu0 0.0
    %298 = vmatprep.subr.mxu0 0.0
    %299 = vmatpush2.xpose.msra.mxu0 0.0
    %300 = vmatprep.subr.mxu0 0.0
    %301 = vmatpush2.xpose.msra.mxu0 0.0
    %302 = vmatprep.subr.mxu0 0.0
    %303 = vmatpush2.xpose.msra.mxu0 0.0
    %304 = vmatprep.subr.mxu0 0.0
    %305 = vmatpush2.xpose.msra.mxu0 0.0
    %306 = vmatprep.subr.mxu0 0.0
    %307 = vmatpush2.xpose.msra.mxu0 0.0
    %308 = vmatprep.subr.mxu0 0.0
    %309 = vmatpush2.xpose.msra.mxu0 0.0
    %310 = vmatprep.subr.mxu0 0.0
    %311 = vmatpush2.xpose.msra.mxu0 0.0
    %312 = vmatprep.subr.mxu0 0.0
    %313 = vmatpush2.xpose.msra.mxu0 0.0
    %314 = vmatprep.subr.mxu0 0.0
    %315 = vmatpush2.xpose.msra.mxu0 0.0
    %316 = vmatprep.subr.mxu0 0.0
    %317 = vmatpush2.xpose.msra.mxu0 0.0
    %318 = vmatprep.subr.mxu0 0.0
    %319 = vmatpush2.xpose.msra.mxu0 0.0
    %320 = vmatprep.subr.mxu0 0.0
    %321 = vmatpush2.xpose.msra.mxu0 0.0
    %322 = vmatprep.subr.mxu0 0.0
    %323 = vmatpush2.xpose.msra.mxu0 0.0
    %324 = vmatprep.mubr.f32.mxu0 0.0
    %325 = vmatmul.mubr.f32.gmra.mxu0 %v255
    %v326 = vpop.f32.mrf.mxu0
    %v327 = vadd.f32 0.0, %v326
    %v328 = vpop.f32.mrf.mxu0
    %329 = vdwg.mxu0
    %v330 = vld [vmem:[#allocation2] sm:$0x1]
    %332 = vset.pattern.permute.xlu0 0
    %333 = vperm.xlu0 %332, %v330
    %v334 = vpop.permute.xlu0 %333
    %v336 = vlaneseq
    %v337 = vshrl.u32 %v336, 7
    %v338 = vsub.s32 0, %v337
    %v339 = vrot.slane %v334, %v338
    %v340 = vadd.f32 %v327, %v339
    %v341 = vtanh.pop %v340
    %vm342 = vcmask 57344
    %343 = vst.msk [vmem:[#allocation9] sm:$0x1] %vm342, %v341
    // Predicated region
    $region42: #{tpu_custom_call.1} parent=1 // pred_check
      _
    $region43: #{tpu_custom_call.1} parent=1 // pred_check_branch
      %345 = sbr.rel (0) target = $region45
    $region44: #{tpu_custom_call.1} parent=1 // pred_region
      %s347 = ssub.s32 16, 16
      %348 = vsyncadd [#allocation5], %s347
      %s350 = sshll.u32 [#allocation9], 4
      %s351 = int_to_ptr.vmem [resolvable:$true] %s350
      %353 = dma.vmem_to_hbm [thread:$0]  %s351, 16, %s7, [#allocation5]
    $region45: #{tpu_custom_call.1} parent=1 // pred_fallthru
      _
    // Predicated region
    $region46: #{tpu_custom_call.1} parent=1 // pred_check
      _
    $region47: #{tpu_custom_call.1} parent=1 // pred_check_branch
      %355 = sbr.rel (0) target = $region49
    $region48: #{tpu_custom_call.1} parent=1 // pred_region
      %356 = dma.done [#allocation5], 16
    $region49: #{tpu_custom_call.1} parent=1 // pred_fallthru
      _
    %357 = vsyncpa [#allocation4], 1
    %358 = vsyncpa [#allocation7], 1
    %359 = vsyncpa [#allocation5], 1

</llo_original>
